<compile_context>
chip_gen: v7x
topology: tpu7x:2x2x1
jax: 0.10.0
libtpu: 0.0.40
codegen_flags: <defaults>
</compile_context>

<pallas_src>
import functools
import math

import numpy as np
import jax
import jax.numpy as jnp
from jax import lax
from jax.experimental import pallas as pl
from jax.experimental.pallas import tpu as pltpu

_EPS = 1e-4                    # small-angle threshold (Taylor fallback)
_EPS2 = _EPS * _EPS            # compare against theta^2 (avoids a sqrt on the guard path)
_LANE = 128
_MAX_ROW_BLOCK = 1024          # rows (of 128 lanes) per grid step; ~12 MiB double-buffered
_SMALL_N_FALLBACK = 2048       # below this many rotvecs, plain jnp is cheaper than a launch


def _round_up(x, m):
    return ((x + m - 1) // m) * m


def _cdiv(a, b):
    return -(-a // b)


def _rodrigues_planes(vx, vy, vz):
    """Shared Rodrigues math. Returns the 9 rotation-matrix planes (plane = 3*row + col)."""
    xx = vx * vx
    yy = vy * vy
    zz = vz * vz
    t2 = xx + yy + zz
    small = t2 < _EPS2
    safe_t2 = jnp.where(small, jnp.ones_like(t2), t2)
    inv_t = lax.rsqrt(safe_t2)            # single EUP op (replaces sqrt + recip + Newton)
    half = 0.5 * (safe_t2 * inv_t)        # = theta / 2
    s = jnp.sin(half)
    c = jnp.cos(half)
    s_over_t = s * inv_t                  # sin(t/2)/t
    # a = sin(t)/t = 2*sin(t/2)*cos(t/2)/t ;  b = (1-cos t)/t^2 = 2*(sin(t/2)/t)^2
    a = jnp.where(small, 1.0 - t2 * (1.0 / 6.0), 2.0 * c * s_over_t)
    b = jnp.where(small, 0.5 - t2 * (1.0 / 24.0), 2.0 * s_over_t * s_over_t)
    # Hoisted shared products reused across the 9 outputs.
    ax = a * vx
    ay = a * vy
    az = a * vz
    bxy = b * vx * vy
    bxz = b * vx * vz
    byz = b * vy * vz
    bxx = b * xx
    byy = b * yy
    bzz = b * zz
    one = jnp.ones_like(vx)
    # R = I + a*K + b*K^2 , K = skew([vx,vy,vz]).
    return (one - (byy + bzz), bxy - az, bxz + ay,       # R00 R01 R02
            bxy + az, one - (bxx + bzz), byz - ax,       # R10 R11 R12
            bxz - ay, byz + ax, one - (bxx + byy))       # R20 R21 R22


def _rotvec_to_rotmat_kernel(v_ref, r_ref):
    # v_ref: (3, RB, 128) f32 ; r_ref: (9, RB, 128) f32 -- full (8,128)-aligned tile planes.
    planes = _rodrigues_planes(v_ref[0, :, :], v_ref[1, :, :], v_ref[2, :, :])
    for i in range(9):
        r_ref[i, :, :] = planes[i]


def _rotmat_planes(flat_n3):
    """(n, 3) f32 rotvecs -> (9, n) f32 rotation-matrix planes (plane index = 3*row + col)."""
    n = flat_n3.shape[0]
    if n < _SMALL_N_FALLBACK:
        # Tiny inputs: the pallas_call launch + tile padding is pure overhead; XLA fuses this.
        vx, vy, vz = flat_n3[:, 0], flat_n3[:, 1], flat_n3[:, 2]
        return jnp.stack(_rodrigues_planes(vx, vy, vz), axis=0)

    rows = _cdiv(n, _LANE)
    num_steps = max(1, _cdiv(rows, _MAX_ROW_BLOCK))
    if rows > 8:
        num_steps = max(2, num_steps)      # >= 2 grid steps so v7x megacore gets both cores
    rb = _round_up(_cdiv(rows, num_steps), 8)   # balanced split, minimal padding waste
    rows_pad = rb * num_steps
    npad = rows_pad * _LANE

    # Zero padding -> identity rotmats in the pad region (no NaNs/Infs).
    planes_in = jnp.pad(flat_n3.T, ((0, 0), (0, npad - n))).reshape(3, rows_pad, _LANE)

    out = pl.pallas_call(
        _rotvec_to_rotmat_kernel,
        out_shape=jax.ShapeDtypeStruct((9, rows_pad, _LANE), jnp.float32),
        grid=(num_steps,),
        in_specs=[pl.BlockSpec((3, rb, _LANE), lambda i: (0, i, 0))],
        out_specs=pl.BlockSpec((9, rb, _LANE), lambda i: (0, i, 0)),
        compiler_params=pltpu.CompilerParams(
            dimension_semantics=("parallel",),
            vmem_limit_bytes=32 * 1024 * 1024),
    )(planes_in)
    return out.reshape(9, npad)[:, :n]


def rotvec_to_rotmat(rotvec):
    """rotvec: (..., 3) -> (..., 3, 3) f32 (Rodrigues, == roma.rotvec_to_rotmat)."""
    rotvec = jnp.asarray(rotvec, jnp.float32)
    lead = rotvec.shape[:-1]
    n = int(math.prod(lead)) if lead else 1
    planes = _rotmat_planes(rotvec.reshape(n, 3))
    return planes.T.reshape(lead + (3, 3))


def six_dim(x):
    """Move to 6d representation and represent translations as deltas."""
    B, T, _ = x.shape
    x4 = x.reshape(B, T, -1, 3)
    trans = x4[:, :, -1]                            # (B, T, 3)
    rotvec = x4[:, :, :-1]                          # (B, T, J-1, 3)
    J1 = rotvec.shape[2]
    n = B * T * J1

    planes = _rotmat_planes(rotvec.reshape(n, 3).astype(jnp.float32))   # (9, n)

    # Standard (..., 3, 3) rotmat layout -- required by the module contract.
    # TODO(synk): if downstream consumers accepted the (9, n) plane layout, this single
    # remaining relayout pass could be dropped entirely.
    rotmat = planes.T.reshape(B, T, J1, 3, 3).astype(x.dtype)

    # 6D part straight from contiguous planes [R00,R01,R10,R11,R20,R21] = [0,1,3,4,6,7],
    # avoiding a second (strided 6-of-9) read of the transposed rotmat.
    six_planes = jnp.concatenate([planes[0:2], planes[3:5], planes[6:8]], axis=0)  # (6, n)
    six = six_planes.T.reshape(B, T, J1 * 6).astype(x.dtype)

    x_out = jnp.concatenate([six, trans], axis=-1)
    return x_out, rotvec, rotmat, trans


def _forward(x, *, mask_trans):
    x_out, rotvec, rotmat, trans = six_dim(x)
    if mask_trans:
        trans = jnp.zeros_like(trans)
    # Tiny (B,T,3) diff: plain jnp so XLA fuses it (a dedicated pallas_call is pure overhead).
    trans_delta = trans[:, 1:] - trans[:, :-1]
    return x_out, rotvec, rotmat, trans, trans_delta


class SimplePreparator:
    # No learnable parameters in the original module -- only two boolean flags.
    def __init__(self, mask_trans, pred_trans, **kwargs):
        self.mask_trans = mask_trans
        self.pred_trans = pred_trans
        self._fwd = jax.jit(functools.partial(_forward, mask_trans=mask_trans))

    def __call__(self, x, **kwargs):
        assert self.mask_trans == (not self.pred_trans), 'mask_trans and pred_trans incoherent'
        x_out, rotvec, rotmat, trans, trans_delta = self._fwd(x)
        return (x_out, rotvec, rotmat, trans, trans_delta, None)


def _rotmat_ref(rotvec):
    """Pure-jnp elementwise Rodrigues reference (sqrt/divide/full-angle sin & cos)."""
    rotvec = jnp.asarray(rotvec, jnp.float32)
    x, y, z = rotvec[..., 0], rotvec[..., 1], rotvec[..., 2]
    t2 = x * x + y * y + z * z
    t = jnp.sqrt(t2)
    small = t < _EPS
    safe = jnp.where(small, 1.0, t)
    a = jnp.where(small, 1.0 - t2 / 6.0, jnp.sin(safe) / safe)
    b = jnp.where(small, 0.5 - t2 / 24.0, (1.0 - jnp.cos(safe)) / (safe * safe))
    r0 = jnp.stack([1.0 - b * (y * y + z * z), b * x * y - a * z, b * x * z + a * y], -1)
    r1 = jnp.stack([b * x * y + a * z, 1.0 - b * (x * x + z * z), b * y * z - a * x], -1)
    r2 = jnp.stack([b * x * z - a * y, b * y * z + a * x, 1.0 - b * (x * x + y * y)], -1)
    return jnp.stack([r0, r1, r2], -2)


if __name__ == "__main__":
    key = jax.random.PRNGKey(0)
    k1, k2, k3 = jax.random.split(key, 3)

    # --- 1) Direct Pallas-kernel check (n = 3200 rotvecs >= fallback threshold) ---------
    rv_big = jax.random.normal(k1, (2, 8, 200, 3), dtype=jnp.float32)
    rm_big = jax.jit(rotvec_to_rotmat)(rv_big)
    jax.block_until_ready(rm_big)
    ref_big = np.asarray(_rotmat_ref(rv_big))
    rm_np = np.asarray(rm_big)
    assert rm_np.shape == (2, 8, 200, 3, 3)
    err = float(np.max(np.abs(rm_np - ref_big)))
    assert err < 2e-5, err
    rtr = np.einsum('...ij,...ik->...jk', rm_np, rm_np)
    assert float(np.max(np.abs(rtr - np.eye(3, dtype=np.float32)))) < 1e-4

    # --- 2) Full module at small shapes (takes the documented jnp fallback path) --------
    B, T, J = 2, 8, 4
    x = jax.random.normal(k2, (B, T, J * 3), dtype=jnp.float32)
    prep = SimplePreparator(mask_trans=False, pred_trans=True)
    out_x, rotvec, rotmat, trans, trans_delta, none_out = prep(x)
    jax.block_until_ready((out_x, rotvec, rotmat, trans, trans_delta))
    assert out_x.shape == (B, T, (J - 1) * 6 + 3)
    assert rotvec.shape == (B, T, J - 1, 3)
    assert rotmat.shape == (B, T, J - 1, 3, 3)
    assert trans.shape == (B, T, 3)
    assert trans_delta.shape == (B, T - 1, 3)
    assert none_out is None
    assert float(np.max(np.abs(np.asarray(rotmat) - np.asarray(_rotmat_ref(rotvec))))) < 2e-5
    assert np.allclose(np.asarray(out_x[..., :-3]).reshape(B, T, J - 1, 3, 2),
                       np.asarray(rotmat[..., :2]), atol=1e-6)
    assert np.allclose(np.asarray(out_x[..., -3:]), np.asarray(trans), atol=1e-6)
    assert np.allclose(np.asarray(trans_delta),
                       np.asarray(trans[:, 1:] - trans[:, :-1]), atol=1e-6)

    # --- 3) Full module at a size that exercises the Pallas path end-to-end -------------
    B2, T2, J2 = 2, 32, 33            # n = 2*32*32 = 2048 rotvecs -> Pallas kernel
    x2 = jax.random.normal(k3, (B2, T2, J2 * 3), dtype=jnp.float32)
    prep2 = SimplePreparator(mask_trans=True, pred_trans=False)
    out_x2, rotvec2, rotmat2, trans2, trans_delta2, _ = prep2(x2)
    jax.block_until_ready((out_x2, rotvec2, rotmat2, trans2, trans_delta2))
    assert out_x2.shape == (B2, T2, (J2 - 1) * 6 + 3)
    assert rotmat2.shape == (B2, T2, J2 - 1, 3, 3)
    assert float(np.max(np.abs(np.asarray(rotmat2) - np.asarray(_rotmat_ref(rotvec2))))) < 2e-5
    rtr2 = np.einsum('...ij,...ik->...jk', np.asarray(rotmat2), np.asarray(rotmat2))
    assert float(np.max(np.abs(rtr2 - np.eye(3, dtype=np.float32)))) < 1e-4
    assert np.allclose(np.asarray(out_x2[..., :-3]).reshape(B2, T2, J2 - 1, 3, 2),
                       np.asarray(rotmat2[..., :2]), atol=1e-6)
    real_trans2 = np.asarray(x2).reshape(B2, T2, -1, 3)[:, :, -1]
    assert np.allclose(np.asarray(out_x2[..., -3:]), real_trans2, atol=1e-6)   # x_out keeps real trans
    assert np.all(np.asarray(trans2) == 0.0)                                   # masked
    assert np.all(np.asarray(trans_delta2) == 0.0)

    print("KERNEL_OK")
</pallas_src>

<mosaic_0001>
module attributes {stable_mosaic.version = 11 : i64} {
  func.func @_rotvec_to_rotmat_kernel(%arg0: i32, %arg1: memref<3x16x128xf32, #tpu.memory_space<vmem>>, %arg2: memref<9x16x128xf32, #tpu.memory_space<vmem>>) attributes {dimension_semantics = [#tpu.dimension_semantics<parallel>], iteration_bounds = array<i64: 2>, scalar_prefetch = 0 : i64, scratch_operands = 0 : i64, tpu.core_type = #tpu.core_type<tc>, window_params = [{transform_indices = @transform_0, window_bounds = array<i64: 3, 16, 128>}, {transform_indices = @transform_1, window_bounds = array<i64: 9, 16, 128>}]} {
    %c0 = arith.constant 0 : index
    %c0_0 = arith.constant 0 : index
    %c0_1 = arith.constant 0 : index
    %0 = vector.load %arg1[%c0, %c0_0, %c0_1] : memref<3x16x128xf32, #tpu.memory_space<vmem>>, vector<1x16x128xf32>
    %1 = vector.shape_cast %0 : vector<1x16x128xf32> to vector<16x128xf32>
    %c1 = arith.constant 1 : index
    %c0_2 = arith.constant 0 : index
    %c0_3 = arith.constant 0 : index
    %2 = vector.load %arg1[%c1, %c0_2, %c0_3] : memref<3x16x128xf32, #tpu.memory_space<vmem>>, vector<1x16x128xf32>
    %3 = vector.shape_cast %2 : vector<1x16x128xf32> to vector<16x128xf32>
    %c2 = arith.constant 2 : index
    %c0_4 = arith.constant 0 : index
    %c0_5 = arith.constant 0 : index
    %4 = vector.load %arg1[%c2, %c0_4, %c0_5] : memref<3x16x128xf32, #tpu.memory_space<vmem>>, vector<1x16x128xf32>
    %5 = vector.shape_cast %4 : vector<1x16x128xf32> to vector<16x128xf32>
    %6 = arith.mulf %1, %1 : vector<16x128xf32>
    %7 = arith.mulf %3, %3 : vector<16x128xf32>
    %8 = arith.mulf %5, %5 : vector<16x128xf32>
    %9 = arith.addf %6, %7 : vector<16x128xf32>
    %10 = arith.addf %9, %8 : vector<16x128xf32>
    %cst = arith.constant 9.99999993E-9 : f32
    %11 = vector.broadcast %cst : f32 to vector<16x128xf32>
    %12 = arith.cmpf olt, %10, %11 : vector<16x128xf32>
    %cst_6 = arith.constant 1.000000e+00 : f32
    %13 = vector.broadcast %cst_6 : f32 to vector<16x128xf32>
    %14 = arith.select %12, %13, %10 : vector<16x128xi1>, vector<16x128xf32>
    %15 = math.rsqrt %14 : vector<16x128xf32>
    %16 = arith.mulf %14, %15 : vector<16x128xf32>
    %cst_7 = arith.constant 5.000000e-01 : f32
    %17 = vector.broadcast %cst_7 : f32 to vector<16x128xf32>
    %18 = arith.mulf %17, %16 : vector<16x128xf32>
    %19 = math.sin %18 : vector<16x128xf32>
    %20 = math.cos %18 : vector<16x128xf32>
    %21 = arith.mulf %19, %15 : vector<16x128xf32>
    %cst_8 = arith.constant 0.166666672 : f32
    %22 = vector.broadcast %cst_8 : f32 to vector<16x128xf32>
    %23 = arith.mulf %10, %22 : vector<16x128xf32>
    %cst_9 = arith.constant 1.000000e+00 : f32
    %24 = vector.broadcast %cst_9 : f32 to vector<16x128xf32>
    %25 = arith.subf %24, %23 : vector<16x128xf32>
    %cst_10 = arith.constant 2.000000e+00 : f32
    %26 = vector.broadcast %cst_10 : f32 to vector<16x128xf32>
    %27 = arith.mulf %26, %20 : vector<16x128xf32>
    %28 = arith.mulf %27, %21 : vector<16x128xf32>
    %29 = arith.select %12, %25, %28 : vector<16x128xi1>, vector<16x128xf32>
    %cst_11 = arith.constant 0.0416666679 : f32
    %30 = vector.broadcast %cst_11 : f32 to vector<16x128xf32>
    %31 = arith.mulf %10, %30 : vector<16x128xf32>
    %cst_12 = arith.constant 5.000000e-01 : f32
    %32 = vector.broadcast %cst_12 : f32 to vector<16x128xf32>
    %33 = arith.subf %32, %31 : vector<16x128xf32>
    %cst_13 = arith.constant 2.000000e+00 : f32
    %34 = vector.broadcast %cst_13 : f32 to vector<16x128xf32>
    %35 = arith.mulf %34, %21 : vector<16x128xf32>
    %36 = arith.mulf %35, %21 : vector<16x128xf32>
    %37 = arith.select %12, %33, %36 : vector<16x128xi1>, vector<16x128xf32>
    %38 = arith.mulf %29, %1 : vector<16x128xf32>
    %39 = arith.mulf %29, %3 : vector<16x128xf32>
    %40 = arith.mulf %29, %5 : vector<16x128xf32>
    %41 = arith.mulf %37, %1 : vector<16x128xf32>
    %42 = arith.mulf %41, %3 : vector<16x128xf32>
    %43 = arith.mulf %37, %1 : vector<16x128xf32>
    %44 = arith.mulf %43, %5 : vector<16x128xf32>
    %45 = arith.mulf %37, %3 : vector<16x128xf32>
    %46 = arith.mulf %45, %5 : vector<16x128xf32>
    %47 = arith.mulf %37, %6 : vector<16x128xf32>
    %48 = arith.mulf %37, %7 : vector<16x128xf32>
    %49 = arith.mulf %37, %8 : vector<16x128xf32>
    %cst_14 = arith.constant 1.000000e+00 : f32
    %50 = vector.broadcast %cst_14 : f32 to vector<16x128xf32>
    %51 = arith.addf %48, %49 : vector<16x128xf32>
    %52 = arith.subf %50, %51 : vector<16x128xf32>
    %53 = arith.subf %42, %40 : vector<16x128xf32>
    %54 = arith.addf %44, %39 : vector<16x128xf32>
    %55 = arith.addf %42, %40 : vector<16x128xf32>
    %56 = arith.addf %47, %49 : vector<16x128xf32>
    %57 = arith.subf %50, %56 : vector<16x128xf32>
    %58 = arith.subf %46, %38 : vector<16x128xf32>
    %59 = arith.subf %44, %39 : vector<16x128xf32>
    %60 = arith.addf %46, %38 : vector<16x128xf32>
    %61 = arith.addf %47, %48 : vector<16x128xf32>
    %62 = arith.subf %50, %61 : vector<16x128xf32>
    %c0_15 = arith.constant 0 : index
    %c0_16 = arith.constant 0 : index
    %c0_17 = arith.constant 0 : index
    %63 = vector.load %arg2[%c0_15, %c0_16, %c0_17] : memref<9x16x128xf32, #tpu.memory_space<vmem>>, vector<1x16x128xf32>
    %64 = vector.shape_cast %63 : vector<1x16x128xf32> to vector<16x128xf32>
    %65 = vector.shape_cast %52 : vector<16x128xf32> to vector<1x16x128xf32>
    tpu.vector_store %arg2[%c0_15, %c0_16, %c0_17], %65 {strides = array<i32>} : memref<9x16x128xf32, #tpu.memory_space<vmem>>, vector<1x16x128xf32>,
    %c1_18 = arith.constant 1 : index
    %c0_19 = arith.constant 0 : index
    %c0_20 = arith.constant 0 : index
    %66 = vector.load %arg2[%c1_18, %c0_19, %c0_20] : memref<9x16x128xf32, #tpu.memory_space<vmem>>, vector<1x16x128xf32>
    %67 = vector.shape_cast %66 : vector<1x16x128xf32> to vector<16x128xf32>
    %68 = vector.shape_cast %53 : vector<16x128xf32> to vector<1x16x128xf32>
    tpu.vector_store %arg2[%c1_18, %c0_19, %c0_20], %68 {strides = array<i32>} : memref<9x16x128xf32, #tpu.memory_space<vmem>>, vector<1x16x128xf32>,
    %c2_21 = arith.constant 2 : index
    %c0_22 = arith.constant 0 : index
    %c0_23 = arith.constant 0 : index
    %69 = vector.load %arg2[%c2_21, %c0_22, %c0_23] : memref<9x16x128xf32, #tpu.memory_space<vmem>>, vector<1x16x128xf32>
    %70 = vector.shape_cast %69 : vector<1x16x128xf32> to vector<16x128xf32>
    %71 = vector.shape_cast %54 : vector<16x128xf32> to vector<1x16x128xf32>
    tpu.vector_store %arg2[%c2_21, %c0_22, %c0_23], %71 {strides = array<i32>} : memref<9x16x128xf32, #tpu.memory_space<vmem>>, vector<1x16x128xf32>,
    %c3 = arith.constant 3 : index
    %c0_24 = arith.constant 0 : index
    %c0_25 = arith.constant 0 : index
    %72 = vector.load %arg2[%c3, %c0_24, %c0_25] : memref<9x16x128xf32, #tpu.memory_space<vmem>>, vector<1x16x128xf32>
    %73 = vector.shape_cast %72 : vector<1x16x128xf32> to vector<16x128xf32>
    %74 = vector.shape_cast %55 : vector<16x128xf32> to vector<1x16x128xf32>
    tpu.vector_store %arg2[%c3, %c0_24, %c0_25], %74 {strides = array<i32>} : memref<9x16x128xf32, #tpu.memory_space<vmem>>, vector<1x16x128xf32>,
    %c4 = arith.constant 4 : index
    %c0_26 = arith.constant 0 : index
    %c0_27 = arith.constant 0 : index
    %75 = vector.load %arg2[%c4, %c0_26, %c0_27] : memref<9x16x128xf32, #tpu.memory_space<vmem>>, vector<1x16x128xf32>
    %76 = vector.shape_cast %75 : vector<1x16x128xf32> to vector<16x128xf32>
    %77 = vector.shape_cast %57 : vector<16x128xf32> to vector<1x16x128xf32>
    tpu.vector_store %arg2[%c4, %c0_26, %c0_27], %77 {strides = array<i32>} : memref<9x16x128xf32, #tpu.memory_space<vmem>>, vector<1x16x128xf32>,
    %c5 = arith.constant 5 : index
    %c0_28 = arith.constant 0 : index
    %c0_29 = arith.constant 0 : index
    %78 = vector.load %arg2[%c5, %c0_28, %c0_29] : memref<9x16x128xf32, #tpu.memory_space<vmem>>, vector<1x16x128xf32>
    %79 = vector.shape_cast %78 : vector<1x16x128xf32> to vector<16x128xf32>
    %80 = vector.shape_cast %58 : vector<16x128xf32> to vector<1x16x128xf32>
    tpu.vector_store %arg2[%c5, %c0_28, %c0_29], %80 {strides = array<i32>} : memref<9x16x128xf32, #tpu.memory_space<vmem>>, vector<1x16x128xf32>,
    %c6 = arith.constant 6 : index
    %c0_30 = arith.constant 0 : index
    %c0_31 = arith.constant 0 : index
    %81 = vector.load %arg2[%c6, %c0_30, %c0_31] : memref<9x16x128xf32, #tpu.memory_space<vmem>>, vector<1x16x128xf32>
    %82 = vector.shape_cast %81 : vector<1x16x128xf32> to vector<16x128xf32>
    %83 = vector.shape_cast %59 : vector<16x128xf32> to vector<1x16x128xf32>
    tpu.vector_store %arg2[%c6, %c0_30, %c0_31], %83 {strides = array<i32>} : memref<9x16x128xf32, #tpu.memory_space<vmem>>, vector<1x16x128xf32>,
    %c7 = arith.constant 7 : index
    %c0_32 = arith.constant 0 : index
    %c0_33 = arith.constant 0 : index
    %84 = vector.load %arg2[%c7, %c0_32, %c0_33] : memref<9x16x128xf32, #tpu.memory_space<vmem>>, vector<1x16x128xf32>
    %85 = vector.shape_cast %84 : vector<1x16x128xf32> to vector<16x128xf32>
    %86 = vector.shape_cast %60 : vector<16x128xf32> to vector<1x16x128xf32>
    tpu.vector_store %arg2[%c7, %c0_32, %c0_33], %86 {strides = array<i32>} : memref<9x16x128xf32, #tpu.memory_space<vmem>>, vector<1x16x128xf32>,
    %c8 = arith.constant 8 : index
    %c0_34 = arith.constant 0 : index
    %c0_35 = arith.constant 0 : index
    %87 = vector.load %arg2[%c8, %c0_34, %c0_35] : memref<9x16x128xf32, #tpu.memory_space<vmem>>, vector<1x16x128xf32>
    %88 = vector.shape_cast %87 : vector<1x16x128xf32> to vector<16x128xf32>
    %89 = vector.shape_cast %62 : vector<16x128xf32> to vector<1x16x128xf32>
    tpu.vector_store %arg2[%c8, %c0_34, %c0_35], %89 {strides = array<i32>} : memref<9x16x128xf32, #tpu.memory_space<vmem>>, vector<1x16x128xf32>,
    return
  }
  func.func @transform_0(%arg0: i32) -> (i32, i32, i32) {
    %c0_i32 = arith.constant 0 : i32
    %c0_i32_0 = arith.constant 0 : i32
    %c0_i32_1 = arith.constant 0 : i32
    return %c0_i32, %arg0, %c0_i32_0 : i32, i32, i32
  }
  func.func @transform_1(%arg0: i32) -> (i32, i32, i32) {
    %c0_i32 = arith.constant 0 : i32
    %c0_i32_0 = arith.constant 0 : i32
    %c0_i32_1 = arith.constant 0 : i32
    return %c0_i32, %arg0, %c0_i32_0 : i32, i32, i32
  }
}

</mosaic_0001>

<llo_original>
// kernel: rotvec_to_rotmat.1
$region0: #{rotvec_to_rotmat.1}
  #allocation0 [shape = 'u32[]', space=smem, size = 0x4, offset = 0x4, fixed_abs, tag = 'smem constant byte address 0x4 - core index']
  #allocation1 [shape = 'u32[144,128]{1,0:T(1,128)}', space=vmem, size = 0x12000, scoped, tag = 'internal scratch']
  %s0 = inlined_call_operand.vmem [shape: f32[3,32,128], index: 0, kind: input, shape index: {}]
  %s1 = inlined_call_operand.vmem [shape: f32[9,32,128], index: 1, kind: output, shape index: {}]
  %s2 = sld [smem:[#allocation0]]
  $region109: #{rotvec_to_rotmat.1} parent=0
    _
  %s4 = ssub.s32 1, %s2
  %s5 = scalar_select 0, %s4, %s2
  $region1: #{rotvec_to_rotmat.1} parent=0
    #allocation2 [shape = 'u8[49152]{0}', space=vmem, size = 0xc000, scoped, tag = 'input window, operand 0']
    #allocation3 [shape = 'u8[147456]{0}', space=vmem, size = 0x24000, scoped, tag = 'output window, operand 0']
    loop: start=0, step=1, limit=4
    $region2: #{rotvec_to_rotmat.1} parent=1 // loop_pre_header
      _
    $region3: #{rotvec_to_rotmat.1} parent=1 // loop_header
      %s7 = sphi 0, %s11
      %p8 = scmp.ge.s32.totalorder %s7, 4
      %s17 = sphi 0, %s19
      %s20 = sphi 0, %s17
      %s21 = sphi 0, %s20
      %s37 = sphi 0, %s21
      %s43 = sphi 0, %s45
      %s46 = sphi 0, %s43
      %s47 = sphi 0, %s46
      %s63 = sphi 0, %s47
    $region4: #{rotvec_to_rotmat.1} parent=1 // loop_header_branch
      %10 = sbr.rel (%p8) target = $region8
    $region5: #{rotvec_to_rotmat.1} parent=1 // loop_body
      %s12 = ssub.s32 %s7, 1
      %s13 = ssub.s32 %s7, 2
      %s14 = sadd.s32 %s7, 1
      %s15 = ssub.s32 %s7, %s14
      %p16 = scmp.eq.s32.totalorder %s15, 0
      %s18 = sadd.s32 %s17, 1
      %s19 = scalar_select %p16, %s17, %s18
      %p22 = pneg %p16
      %p23 = scmp.eq.s32.totalorder %s7, 1
      %p24 = por %p22, %p23
      %p25 = scmp.ne.s32.totalorder %s17, %s20
      %p26 = scmp.eq.s32.totalorder %s7, 0
      %p27 = por %p25, %p26
      %p28 = scmp.ne.s32.totalorder %s17, %s20
      %p29 = scmp.eq.s32.totalorder %s12, 1
      %p30 = por %p28, %p29
      %p31 = scmp.ne.s32.totalorder %s20, %s21
      %p32 = scmp.eq.s32.totalorder %s12, 0
      %p33 = por %p31, %p32
      %p34 = scmp.ne.s32.totalorder %s20, %s21
      %p35 = scmp.eq.s32.totalorder %s13, 1
      %p36 = por %p34, %p35
      %p38 = scmp.ne.s32.totalorder %s21, %s37
      %p39 = scmp.eq.s32.totalorder %s13, 0
      %p40 = por %p38, %p39
      %s41 = ssub.s32 %s7, %s14
      %p42 = scmp.eq.s32.totalorder %s41, 0
      %s44 = sadd.s32 %s43, 1
      %s45 = scalar_select %p42, %s43, %s44
      %p48 = pneg %p42
      %p49 = scmp.eq.s32.totalorder %s7, 1
      %p50 = por %p48, %p49
      %p51 = scmp.ne.s32.totalorder %s43, %s46
      %p52 = scmp.eq.s32.totalorder %s7, 0
      %p53 = por %p51, %p52
      %p54 = scmp.ne.s32.totalorder %s43, %s46
      %p55 = scmp.eq.s32.totalorder %s12, 1
      %p56 = por %p54, %p55
      %p57 = scmp.ne.s32.totalorder %s46, %s47
      %p58 = scmp.eq.s32.totalorder %s12, 0
      %p59 = por %p57, %p58
      %p60 = scmp.ne.s32.totalorder %s46, %s47
      %p61 = scmp.eq.s32.totalorder %s13, 1
      %p62 = por %p60, %p61
      %p64 = scmp.ne.s32.totalorder %s47, %s63
      %p65 = scmp.eq.s32.totalorder %s13, 0
      %p66 = por %p64, %p65
      %p67 = scmp.le.s32.totalorder 1, %s7
      %p68 = scmp.lt.s32.totalorder %s7, 3
      %p69 = pnand %p67, %p68
      %p70 = pneg %p69
      // Predicated region
      $region9: #{rotvec_to_rotmat.1} parent=5 // pred_check
        _
      $region10: #{rotvec_to_rotmat.1} parent=5 // pred_check_branch
        %72 = sbr.rel (%p69) target = $region12
      $region11: #{rotvec_to_rotmat.1} parent=5 // pred_region
        %s73 = ssub.s32 %s7, 1
      $region12: #{rotvec_to_rotmat.1} parent=5 // pred_fallthru
        _
      %p74 = scmp.lt.s32.totalorder %s7, 2
      // Predicated region
      $region13: #{rotvec_to_rotmat.1} parent=5 // pred_check
        %p75 = pneg %p74
      $region14: #{rotvec_to_rotmat.1} parent=5 // pred_check_branch
        %77 = sbr.rel (%p75) target = $region16
      $region15: #{rotvec_to_rotmat.1} parent=5 // pred_region
        // Predicated region
        $region17: #{rotvec_to_rotmat.1} parent=15 // pred_check
          %p78 = pneg %p27
        $region18: #{rotvec_to_rotmat.1} parent=15 // pred_check_branch
          %80 = sbr.rel (%p78) target = $region20
        $region19: #{rotvec_to_rotmat.1} parent=15 // pred_region
          %s81 = sand.u32 %s17, 1
          %s82 = sand.u32 %s17, 1
          %s83 = smul.addr %s82, 48
          %s84 = scalar_lea.vmem [#allocation2], %s83
          %s85 = smul.u32 2, %s7
          %s86 = smul.addr %s85, 8
          %s87 = scalar_lea.vmem %s0, %s86
          // Predicated region
          $region21: #{rotvec_to_rotmat.1} parent=19 // pred_check
            _
          $region22: #{rotvec_to_rotmat.1} parent=19 // pred_check_branch
            %89 = sbr.rel (0) target = $region24
          $region23: #{rotvec_to_rotmat.1} parent=19 // pred_region
            // Predicated region
            $region25: #{rotvec_to_rotmat.1} parent=23 // pred_check
              _
            $region26: #{rotvec_to_rotmat.1} parent=23 // pred_check_branch
              %91 = sbr.rel (0) target = $region28
            $region27: #{rotvec_to_rotmat.1} parent=23 // pred_region
              // Predicated region
              $region40: #{rotvec_to_rotmat.1} parent=27 // pred_check
                _
              $region41: #{rotvec_to_rotmat.1} parent=27 // pred_check_branch
                %116 = sbr.rel (0) target = $region43
              $region42: #{rotvec_to_rotmat.1} parent=27 // pred_region
                loop: start=0, step=1, limit=1
                $region44: #{rotvec_to_rotmat.1} parent=42 // loop_pre_header
                  _
                $region45: #{rotvec_to_rotmat.1} parent=42 // loop_header
                  %s118 = sphi 0, %s122
                  %p119 = scmp.ge.s32.totalorder %s118, 1
                  %s123 = sphi %s87, %s87
                  %s124 = sphi %s84, %s84
                $region46: #{rotvec_to_rotmat.1} parent=42 // loop_header_branch
                  %121 = sbr.rel (%p119) target = $region50
                $region47: #{rotvec_to_rotmat.1} parent=42 // loop_body
                  %v125 = vld [vmem:[%s123] sm:$0xff]
                  %126 = vst [vmem:[%s124] sm:$0xff] %v125
                  %v127 = vld [vmem:[%s123 + $0x8] sm:$0xff]
                  %128 = vst [vmem:[%s124 + $0x8] sm:$0xff] %v127
                  %v129 = vld [vmem:[%s123 + $0x20] sm:$0xff]
                  %130 = vst [vmem:[%s124 + $0x10] sm:$0xff] %v129
                  %v131 = vld [vmem:[%s123 + $0x28] sm:$0xff]
                  %132 = vst [vmem:[%s124 + $0x18] sm:$0xff] %v131
                  %v133 = vld [vmem:[%s123 + $0x40] sm:$0xff]
                  %134 = vst [vmem:[%s124 + $0x20] sm:$0xff] %v133
                  %v135 = vld [vmem:[%s123 + $0x48] sm:$0xff]
                  %136 = vst [vmem:[%s124 + $0x28] sm:$0xff] %v135
                $region48: #{rotvec_to_rotmat.1} parent=42 // loop_footer
                  %s122 = sadd.s32 1, %s118
                $region49: #{rotvec_to_rotmat.1} parent=42 // loop_footer_branch
                  %117 = sbr.rel target = $region45
                $region50: #{rotvec_to_rotmat.1} parent=42 // loop_exit
                  _
              $region43: #{rotvec_to_rotmat.1} parent=27 // pred_fallthru
                _
              // Predicated region
              $region51: #{rotvec_to_rotmat.1} parent=27 // pred_check
                _
              $region52: #{rotvec_to_rotmat.1} parent=27 // pred_check_branch
                %138 = sbr.rel target = $region54
              $region53: #{rotvec_to_rotmat.1} parent=27 // pred_region
                _
              $region54: #{rotvec_to_rotmat.1} parent=27 // pred_fallthru
                _
            $region28: #{rotvec_to_rotmat.1} parent=23 // pred_fallthru
              _
            // Predicated region
            $region29: #{rotvec_to_rotmat.1} parent=23 // pred_check
              _
            $region30: #{rotvec_to_rotmat.1} parent=23 // pred_check_branch
              %93 = sbr.rel target = $region32
            $region31: #{rotvec_to_rotmat.1} parent=23 // pred_region
              loop: start=0, step=1, limit=1
              $region33: #{rotvec_to_rotmat.1} parent=31 // loop_pre_header
                _
              $region34: #{rotvec_to_rotmat.1} parent=31 // loop_header
                %s96 = sphi 0, %s100
                %p97 = scmp.ge.s32.totalorder %s96, 1
                %s101 = sphi %s87, %s87
                %s102 = sphi %s84, %s84
              $region35: #{rotvec_to_rotmat.1} parent=31 // loop_header_branch
                %99 = sbr.rel (%p97) target = $region39
              $region36: #{rotvec_to_rotmat.1} parent=31 // loop_body
                %v103 = vld [vmem:[%s101] sm:$0xff]
                %104 = vst [vmem:[%s102] sm:$0xff] %v103
                %v105 = vld [vmem:[%s101 + $0x8] sm:$0xff]
                %106 = vst [vmem:[%s102 + $0x8] sm:$0xff] %v105
                %v107 = vld [vmem:[%s101 + $0x20] sm:$0xff]
                %108 = vst [vmem:[%s102 + $0x10] sm:$0xff] %v107
                %v109 = vld [vmem:[%s101 + $0x28] sm:$0xff]
                %110 = vst [vmem:[%s102 + $0x18] sm:$0xff] %v109
                %v111 = vld [vmem:[%s101 + $0x40] sm:$0xff]
                %112 = vst [vmem:[%s102 + $0x20] sm:$0xff] %v111
                %v113 = vld [vmem:[%s101 + $0x48] sm:$0xff]
                %114 = vst [vmem:[%s102 + $0x28] sm:$0xff] %v113
              $region37: #{rotvec_to_rotmat.1} parent=31 // loop_footer
                %s100 = sadd.s32 1, %s96
              $region38: #{rotvec_to_rotmat.1} parent=31 // loop_footer_branch
                %95 = sbr.rel target = $region34
              $region39: #{rotvec_to_rotmat.1} parent=31 // loop_exit
                _
            $region32: #{rotvec_to_rotmat.1} parent=23 // pred_fallthru
              _
          $region24: #{rotvec_to_rotmat.1} parent=19 // pred_fallthru
            _
          %139 = vnop
        $region20: #{rotvec_to_rotmat.1} parent=15 // pred_fallthru
          _
      $region16: #{rotvec_to_rotmat.1} parent=5 // pred_fallthru
        _
      %p140 = scmp.le.s32.totalorder 1, %s7
      %p141 = scmp.lt.s32.totalorder %s7, 3
      %p142 = pnand %p140, %p141
      %p143 = pneg %p142
      // Predicated region
      $region55: #{rotvec_to_rotmat.1} parent=5 // pred_check
        _
      $region56: #{rotvec_to_rotmat.1} parent=5 // pred_check_branch
        %145 = sbr.rel (%p142) target = $region58
      $region57: #{rotvec_to_rotmat.1} parent=5 // pred_region
        %s146 = ssub.s32 %s7, 1
        %s147 = sand.u32 %s20, 1
        %s148 = sand.u32 %s20, 1
        %s149 = smul.addr %s148, 48
        %s150 = scalar_lea.vmem [#allocation2], %s149
        // Predicated region
        $region59: #{rotvec_to_rotmat.1} parent=57 // pred_check
          %p151 = pneg %p33
        $region60: #{rotvec_to_rotmat.1} parent=57 // pred_check_branch
          %153 = sbr.rel (%p151) target = $region62
        $region61: #{rotvec_to_rotmat.1} parent=57 // pred_region
          _
        $region62: #{rotvec_to_rotmat.1} parent=57 // pred_fallthru
          _
        %s154 = sand.u32 %s20, 1
        %s155 = sand.u32 %s20, 1
        %s156 = smul.addr %s155, 48
        %s157 = scalar_lea.vmem [#allocation2], %s156
        %p158 = pneg %p33
        %p159 = pneg %p30
        %p160 = pneg %p59
        %p161 = pneg %p56
        %s162 = sand.u32 %s46, 1
        %s163 = sand.u32 %s46, 1
        %s164 = smul.addr %s163, 144
        %s165 = scalar_lea.vmem [#allocation3], %s164
        %s166 = smul.u32 2, %s12
        %s167 = smul.u32 2, %s12
        %v168 = vld [vmem:[%s150] sm:$0xff]
        %v169 = vld [vmem:[%s150 + $0x8] sm:$0xff]
        %s170 = scalar_lea.vmem %s150, 16 [#allocation2]
        %v171 = vld [vmem:[%s170] sm:$0xff]
        %v172 = vld [vmem:[%s170 + $0x8] sm:$0xff]
        %s173 = scalar_lea.vmem %s150, 32 [#allocation2]
        %v174 = vld [vmem:[%s173] sm:$0xff]
        %v175 = vld [vmem:[%s173 + $0x8] sm:$0xff]
        %v176 = vmul.f32 %v168, %v168
        %v177 = vmul.f32 %v169, %v169
        %v178 = vmul.f32 %v171, %v171
        %v179 = vmul.f32 %v172, %v172
        %v180 = vmul.f32 %v174, %v174
        %v181 = vmul.f32 %v175, %v175
        %v182 = vadd.f32 %v176, %v178
        %v183 = vadd.f32 %v177, %v179
        %v184 = vadd.f32 %v182, %v180
        %v185 = vadd.f32 %v183, %v181
        %vm186 = vcmp.lt.f32.partialorder %v184, 1e-08
        %vm187 = vcmp.lt.f32.partialorder %v185, 1e-08
        %v188 = vsel %vm186, 1.0, %v184
        %v189 = vsel %vm187, 1.0, %v185
        %v190 = vrsqrt.pop %v188
        %v191 = vrsqrt.pop %v189
        %v192 = vmul.f32 %v188, %v190
        %v193 = vmul.f32 %v189, %v191
        %v194 = vmul.f32 %v192, 0.5
        %v195 = vmul.f32 %v193, 0.5
        %v196 = vand.u32 2147483647, %v194
        %vm197 = vcmp.le.f32.partialorder %v196, 0.7853982
        %vm198 = vcmp.lt.s32.totalorder %v194, 0
        %v199 = vand.u32 %v194, 2139095040
        %v200 = vshrl.u32 %v199, 23
        %v201 = vsub.s32 %v200, 127
        %v202 = vand.u32 2147483647, %v194
        %v203 = vand.u32 %v202, 8388607
        %v204 = vor.u32 %v203, 8388608
        %v205 = vsub.s32 0, %v204
        %v206 = vadd.s32 %v201, 1
        %vm207 = vcmp.gt.s32.totalorder %v206, 0
        %v208 = vsel %vm207, %v206, 0
        %v209 = vshrl.u32 %v208, 5
        %v210 = vand.u32 %v208, 31
        %v211 = vsub.s32 32, %v210
        %v212 = vshrl.u32 683565275, %v211
        %v213 = vshll.u32 683565275, %v210
        %v214 = vshrl.u32 2475754826, %v211
        %v215 = vor.u32 %v213, %v214
        %v216 = vshll.u32 2475754826, %v210
        %v217 = vshrl.u32 2131351028, %v211
        %v218 = vor.u32 %v216, %v217
        %v219 = vshll.u32 2131351028, %v210
        %v220 = vshrl.u32 2102212464, %v211
        %v221 = vor.u32 %v219, %v220
        %v222 = vshll.u32 2102212464, %v210
        %v223 = vshrl.u32 920167782, %v211
        %v224 = vor.u32 %v222, %v223
        %v225 = vshll.u32 920167782, %v210
        %v226 = vshrl.u32 1326507024, %v211
        %v227 = vor.u32 %v225, %v226
        %vm228 = vcmp.lt.s32.totalorder %v209, 1
        %vm229 = vcmp.lt.s32.totalorder %v209, 2
        %vm230 = vcmp.lt.s32.totalorder %v209, 3
        %vm231 = vcmp.lt.s32.totalorder %v209, 4
        %v232 = vsel %vm228, %v212, %v215
        %v233 = vsel %vm231, %v221, 2102212464
        %v234 = vsel %vm230, %v218, %v233
        %v235 = vsel %vm229, %v232, %v234
        %v236 = vsel %vm228, %v215, %v218
        %v237 = vsel %vm231, %v224, 920167782
        %v238 = vsel %vm230, %v221, %v237
        %v239 = vsel %vm229, %v236, %v238
        %v240 = vsel %vm228, %v218, %v221
        %v241 = vsel %vm231, %v227, 1326507024
        %v242 = vsel %vm230, %v224, %v241
        %v243 = vsel %vm229, %v240, %v242
        %v244 = vshll.u32 %v204, 8
        %v245 = vmul.u32.u64.compose %v244, %v243
        %v246 = vextract.low.u32 %v245
        %v247 = vextract.high.u32 %v245
        %v248 = vmul.u32.u64.compose %v244, %v239
        %v249 = vextract.low.u32 %v248
        %v250 = vextract.high.u32 %v248
        %v251 = vmul.u32 %v244, %v235
        %v252 = vadd.s32 %v247, %v249
        %vm253 = vc.u32 %v247, %v249
        %v254 = vadd.s32 %v250, 1
        %v255 = vsel %vm253, %v254, %v250
        %v256 = vadd.s32 %v251, %v255
        %v257 = vadd.s32 %v256, 536870912
        %v258 = vshrl.u32 %v257, 30
        %v259 = vshll.u32 %v258, 30
        %v260 = vsub.s32 %v256, %v259
        %vm261 = vcmp.lt.s32.totalorder %v260, 0
        %v262 = vsub.s32 0, %v260
        %v263 = vsel %vm261, %v262, %v260
        %v264 = vclz %v263
        %v265 = vsub.s32 %v264, 2
        %vm266 = vcmp.gt.s32.totalorder 0, %v265
        %v267 = vsel %vm266, 0, %v265
        %v268 = vsub.s32 32, %v267
        %v269 = vshll.u32 %v260, %v267
        %v270 = vshrl.u32 %v252, %v268
        %v271 = vor.u32 %v269, %v270
        %v272 = vsub.s32 4294967266, %v267
        %v273 = vadd.s32 %v272, 127
        %v274 = vshll.u32 %v273, 23
        %v275 = vor.u32 4788187, %v274
        %v276 = vand.u32 2147483647, %v275
        %v278 = vcvt.s32.f32 %v271
        %v279 = vmul.f32 %v278, %v276
        %v280 = vxor.u32 %v279, 2147483648
        %v281 = vsel %vm198, %v280, %v279
        %v282 = vsub.s32 4, %v258
        %v283 = vsel %vm198, %v282, %v258
        %v284 = vsel %vm197, %v194, %v281
        %v285 = vsel %vm197, 0, %v283
        %v286 = vcosq.f32.pop %v284
        %v287 = vsinq.f32.pop %v284
        %vm288 = vweird.f32 %v194
        %v289 = vadd.s32 %v285, 3
        %v290 = vand.u32 %v289, 3
        %vm291 = vcmp.lt.s32.totalorder %v290, 2
        %vm292 = vcmp.eq.s32.totalorder %v290, 0
        %v293 = vxor.u32 %v287, 2147483648
        %v294 = vsel %vm292, %v286, %v293
        %vm295 = vcmp.eq.s32.totalorder %v290, 2
        %v296 = vxor.u32 %v286, 2147483648
        %v297 = vsel %vm295, %v296, %v287
        %v298 = vsel %vm291, %v294, %v297
        %v299 = vsel %vm288, nan, %v298
        %v300 = vand.u32 2147483647, %v195
        %vm301 = vcmp.le.f32.partialorder %v300, 0.7853982
        %vm302 = vcmp.lt.s32.totalorder %v195, 0
        %v303 = vand.u32 %v195, 2139095040
        %v304 = vshrl.u32 %v303, 23
        %v305 = vsub.s32 %v304, 127
        %v306 = vand.u32 2147483647, %v195
        %v307 = vand.u32 %v306, 8388607
        %v308 = vor.u32 %v307, 8388608
        %v309 = vsub.s32 0, %v308
        %v310 = vadd.s32 %v305, 1
        %vm311 = vcmp.gt.s32.totalorder %v310, 0
        %v312 = vsel %vm311, %v310, 0
        %v313 = vshrl.u32 %v312, 5
        %v314 = vand.u32 %v312, 31
        %v315 = vsub.s32 32, %v314
        %v316 = vshrl.u32 683565275, %v315
        %v317 = vshll.u32 683565275, %v314
        %v318 = vshrl.u32 2475754826, %v315
        %v319 = vor.u32 %v317, %v318
        %v320 = vshll.u32 2475754826, %v314
        %v321 = vshrl.u32 2131351028, %v315
        %v322 = vor.u32 %v320, %v321
        %v323 = vshll.u32 2131351028, %v314
        %v324 = vshrl.u32 2102212464, %v315
        %v325 = vor.u32 %v323, %v324
        %v326 = vshll.u32 2102212464, %v314
        %v327 = vshrl.u32 920167782, %v315
        %v328 = vor.u32 %v326, %v327
        %v329 = vshll.u32 920167782, %v314
        %v330 = vshrl.u32 1326507024, %v315
        %v331 = vor.u32 %v329, %v330
        %vm332 = vcmp.lt.s32.totalorder %v313, 1
        %vm333 = vcmp.lt.s32.totalorder %v313, 2
        %vm334 = vcmp.lt.s32.totalorder %v313, 3
        %vm335 = vcmp.lt.s32.totalorder %v313, 4
        %v336 = vsel %vm332, %v316, %v319
        %v337 = vsel %vm335, %v325, 2102212464
        %v338 = vsel %vm334, %v322, %v337
        %v339 = vsel %vm333, %v336, %v338
        %v340 = vsel %vm332, %v319, %v322
        %v341 = vsel %vm335, %v328, 920167782
        %v342 = vsel %vm334, %v325, %v341
        %v343 = vsel %vm333, %v340, %v342
        %v344 = vsel %vm332, %v322, %v325
        %v345 = vsel %vm335, %v331, 1326507024
        %v346 = vsel %vm334, %v328, %v345
        %v347 = vsel %vm333, %v344, %v346
        %v348 = vshll.u32 %v308, 8
        %v349 = vmul.u32.u64.compose %v348, %v347
        %v350 = vextract.low.u32 %v349
        %v351 = vextract.high.u32 %v349
        %v352 = vmul.u32.u64.compose %v348, %v343
        %v353 = vextract.low.u32 %v352
        %v354 = vextract.high.u32 %v352
        %v355 = vmul.u32 %v348, %v339
        %v356 = vadd.s32 %v351, %v353
        %vm357 = vc.u32 %v351, %v353
        %v358 = vadd.s32 %v354, 1
        %v359 = vsel %vm357, %v358, %v354
        %v360 = vadd.s32 %v355, %v359
        %v361 = vadd.s32 %v360, 536870912
        %v362 = vshrl.u32 %v361, 30
        %v363 = vshll.u32 %v362, 30
        %v364 = vsub.s32 %v360, %v363
        %vm365 = vcmp.lt.s32.totalorder %v364, 0
        %v366 = vsub.s32 0, %v364
        %v367 = vsel %vm365, %v366, %v364
        %v368 = vclz %v367
        %v369 = vsub.s32 %v368, 2
        %vm370 = vcmp.gt.s32.totalorder 0, %v369
        %v371 = vsel %vm370, 0, %v369
        %v372 = vsub.s32 32, %v371
        %v373 = vshll.u32 %v364, %v371
        %v374 = vshrl.u32 %v356, %v372
        %v375 = vor.u32 %v373, %v374
        %v376 = vsub.s32 4294967266, %v371
        %v377 = vadd.s32 %v376, 127
        %v378 = vshll.u32 %v377, 23
        %v379 = vor.u32 4788187, %v378
        %v380 = vand.u32 2147483647, %v379
        %v382 = vcvt.s32.f32 %v375
        %v383 = vmul.f32 %v382, %v380
        %v384 = vxor.u32 %v383, 2147483648
        %v385 = vsel %vm302, %v384, %v383
        %v386 = vsub.s32 4, %v362
        %v387 = vsel %vm302, %v386, %v362
        %v388 = vsel %vm301, %v195, %v385
        %v389 = vsel %vm301, 0, %v387
        %v390 = vcosq.f32.pop %v388
        %v391 = vsinq.f32.pop %v388
        %vm392 = vweird.f32 %v195
        %v393 = vadd.s32 %v389, 3
        %v394 = vand.u32 %v393, 3
        %vm395 = vcmp.lt.s32.totalorder %v394, 2
        %vm396 = vcmp.eq.s32.totalorder %v394, 0
        %v397 = vxor.u32 %v391, 2147483648
        %v398 = vsel %vm396, %v390, %v397
        %vm399 = vcmp.eq.s32.totalorder %v394, 2
        %v400 = vxor.u32 %v390, 2147483648
        %v401 = vsel %vm399, %v400, %v391
        %v402 = vsel %vm395, %v398, %v401
        %v403 = vsel %vm392, nan, %v402
        %v404 = vand.u32 2147483647, %v194
        %vm405 = vcmp.le.f32.partialorder %v404, 0.7853982
        %vm406 = vcmp.lt.s32.totalorder %v194, 0
        %v407 = vand.u32 %v194, 2139095040
        %v408 = vshrl.u32 %v407, 23
        %v409 = vsub.s32 %v408, 127
        %v410 = vand.u32 2147483647, %v194
        %v411 = vand.u32 %v410, 8388607
        %v412 = vor.u32 %v411, 8388608
        %v413 = vsub.s32 0, %v412
        %v414 = vadd.s32 %v409, 1
        %vm415 = vcmp.gt.s32.totalorder %v414, 0
        %v416 = vsel %vm415, %v414, 0
        %v417 = vshrl.u32 %v416, 5
        %v418 = vand.u32 %v416, 31
        %v419 = vsub.s32 32, %v418
        %v420 = vshrl.u32 683565275, %v419
        %v421 = vshll.u32 683565275, %v418
        %v422 = vshrl.u32 2475754826, %v419
        %v423 = vor.u32 %v421, %v422
        %v424 = vshll.u32 2475754826, %v418
        %v425 = vshrl.u32 2131351028, %v419
        %v426 = vor.u32 %v424, %v425
        %v427 = vshll.u32 2131351028, %v418
        %v428 = vshrl.u32 2102212464, %v419
        %v429 = vor.u32 %v427, %v428
        %v430 = vshll.u32 2102212464, %v418
        %v431 = vshrl.u32 920167782, %v419
        %v432 = vor.u32 %v430, %v431
        %v433 = vshll.u32 920167782, %v418
        %v434 = vshrl.u32 1326507024, %v419
        %v435 = vor.u32 %v433, %v434
        %vm436 = vcmp.lt.s32.totalorder %v417, 1
        %vm437 = vcmp.lt.s32.totalorder %v417, 2
        %vm438 = vcmp.lt.s32.totalorder %v417, 3
        %vm439 = vcmp.lt.s32.totalorder %v417, 4
        %v440 = vsel %vm436, %v420, %v423
        %v441 = vsel %vm439, %v429, 2102212464
        %v442 = vsel %vm438, %v426, %v441
        %v443 = vsel %vm437, %v440, %v442
        %v444 = vsel %vm436, %v423, %v426
        %v445 = vsel %vm439, %v432, 920167782
        %v446 = vsel %vm438, %v429, %v445
        %v447 = vsel %vm437, %v444, %v446
        %v448 = vsel %vm436, %v426, %v429
        %v449 = vsel %vm439, %v435, 1326507024
        %v450 = vsel %vm438, %v432, %v449
        %v451 = vsel %vm437, %v448, %v450
        %v452 = vshll.u32 %v412, 8
        %v453 = vmul.u32.u64.compose %v452, %v451
        %v454 = vextract.low.u32 %v453
        %v455 = vextract.high.u32 %v453
        %v456 = vmul.u32.u64.compose %v452, %v447
        %v457 = vextract.low.u32 %v456
        %v458 = vextract.high.u32 %v456
        %v459 = vmul.u32 %v452, %v443
        %v460 = vadd.s32 %v455, %v457
        %vm461 = vc.u32 %v455, %v457
        %v462 = vadd.s32 %v458, 1
        %v463 = vsel %vm461, %v462, %v458
        %v464 = vadd.s32 %v459, %v463
        %v465 = vadd.s32 %v464, 536870912
        %v466 = vshrl.u32 %v465, 30
        %v467 = vshll.u32 %v466, 30
        %v468 = vsub.s32 %v464, %v467
        %vm469 = vcmp.lt.s32.totalorder %v468, 0
        %v470 = vsub.s32 0, %v468
        %v471 = vsel %vm469, %v470, %v468
        %v472 = vclz %v471
        %v473 = vsub.s32 %v472, 2
        %vm474 = vcmp.gt.s32.totalorder 0, %v473
        %v475 = vsel %vm474, 0, %v473
        %v476 = vsub.s32 32, %v475
        %v477 = vshll.u32 %v468, %v475
        %v478 = vshrl.u32 %v460, %v476
        %v479 = vor.u32 %v477, %v478
        %v480 = vsub.s32 4294967266, %v475
        %v481 = vadd.s32 %v480, 127
        %v482 = vshll.u32 %v481, 23
        %v483 = vor.u32 4788187, %v482
        %v484 = vand.u32 2147483647, %v483
        %v486 = vcvt.s32.f32 %v479
        %v487 = vmul.f32 %v486, %v484
        %v488 = vxor.u32 %v487, 2147483648
        %v489 = vsel %vm406, %v488, %v487
        %v490 = vsub.s32 4, %v466
        %v491 = vsel %vm406, %v490, %v466
        %v492 = vsel %vm405, %v194, %v489
        %v493 = vsel %vm405, 0, %v491
        %v494 = vcosq.f32.pop %v492
        %v495 = vsinq.f32.pop %v492
        %vm496 = vweird.f32 %v194
        %v497 = vand.u32 %v493, 3
        %vm498 = vcmp.lt.s32.totalorder %v497, 2
        %vm499 = vcmp.eq.s32.totalorder %v497, 0
        %v500 = vxor.u32 %v495, 2147483648
        %v501 = vsel %vm499, %v494, %v500
        %vm502 = vcmp.eq.s32.totalorder %v497, 2
        %v503 = vxor.u32 %v494, 2147483648
        %v504 = vsel %vm502, %v503, %v495
        %v505 = vsel %vm498, %v501, %v504
        %v506 = vsel %vm496, nan, %v505
        %v507 = vand.u32 2147483647, %v195
        %vm508 = vcmp.le.f32.partialorder %v507, 0.7853982
        %vm509 = vcmp.lt.s32.totalorder %v195, 0
        %v510 = vand.u32 %v195, 2139095040
        %v511 = vshrl.u32 %v510, 23
        %v512 = vsub.s32 %v511, 127
        %v513 = vand.u32 2147483647, %v195
        %v514 = vand.u32 %v513, 8388607
        %v515 = vor.u32 %v514, 8388608
        %v516 = vsub.s32 0, %v515
        %v517 = vadd.s32 %v512, 1
        %vm518 = vcmp.gt.s32.totalorder %v517, 0
        %v519 = vsel %vm518, %v517, 0
        %v520 = vshrl.u32 %v519, 5
        %v521 = vand.u32 %v519, 31
        %v522 = vsub.s32 32, %v521
        %v523 = vshrl.u32 683565275, %v522
        %v524 = vshll.u32 683565275, %v521
        %v525 = vshrl.u32 2475754826, %v522
        %v526 = vor.u32 %v524, %v525
        %v527 = vshll.u32 2475754826, %v521
        %v528 = vshrl.u32 2131351028, %v522
        %v529 = vor.u32 %v527, %v528
        %v530 = vshll.u32 2131351028, %v521
        %v531 = vshrl.u32 2102212464, %v522
        %v532 = vor.u32 %v530, %v531
        %v533 = vshll.u32 2102212464, %v521
        %v534 = vshrl.u32 920167782, %v522
        %v535 = vor.u32 %v533, %v534
        %v536 = vshll.u32 920167782, %v521
        %v537 = vshrl.u32 1326507024, %v522
        %v538 = vor.u32 %v536, %v537
        %vm539 = vcmp.lt.s32.totalorder %v520, 1
        %vm540 = vcmp.lt.s32.totalorder %v520, 2
        %vm541 = vcmp.lt.s32.totalorder %v520, 3
        %vm542 = vcmp.lt.s32.totalorder %v520, 4
        %v543 = vsel %vm539, %v523, %v526
        %v544 = vsel %vm542, %v532, 2102212464
        %v545 = vsel %vm541, %v529, %v544
        %v546 = vsel %vm540, %v543, %v545
        %v547 = vsel %vm539, %v526, %v529
        %v548 = vsel %vm542, %v535, 920167782
        %v549 = vsel %vm541, %v532, %v548
        %v550 = vsel %vm540, %v547, %v549
        %v551 = vsel %vm539, %v529, %v532
        %v552 = vsel %vm542, %v538, 1326507024
        %v553 = vsel %vm541, %v535, %v552
        %v554 = vsel %vm540, %v551, %v553
        %v555 = vshll.u32 %v515, 8
        %v556 = vmul.u32.u64.compose %v555, %v554
        %v557 = vextract.low.u32 %v556
        %v558 = vextract.high.u32 %v556
        %v559 = vmul.u32.u64.compose %v555, %v550
        %v560 = vextract.low.u32 %v559
        %v561 = vextract.high.u32 %v559
        %v562 = vmul.u32 %v555, %v546
        %v563 = vadd.s32 %v558, %v560
        %vm564 = vc.u32 %v558, %v560
        %v565 = vadd.s32 %v561, 1
        %v566 = vsel %vm564, %v565, %v561
        %v567 = vadd.s32 %v562, %v566
        %v568 = vadd.s32 %v567, 536870912
        %v569 = vshrl.u32 %v568, 30
        %v570 = vshll.u32 %v569, 30
        %v571 = vsub.s32 %v567, %v570
        %vm572 = vcmp.lt.s32.totalorder %v571, 0
        %v573 = vsub.s32 0, %v571
        %v574 = vsel %vm572, %v573, %v571
        %v575 = vclz %v574
        %v576 = vsub.s32 %v575, 2
        %vm577 = vcmp.gt.s32.totalorder 0, %v576
        %v578 = vsel %vm577, 0, %v576
        %v579 = vsub.s32 32, %v578
        %v580 = vshll.u32 %v571, %v578
        %v581 = vshrl.u32 %v563, %v579
        %v582 = vor.u32 %v580, %v581
        %v583 = vsub.s32 4294967266, %v578
        %v584 = vadd.s32 %v583, 127
        %v585 = vshll.u32 %v584, 23
        %v586 = vor.u32 4788187, %v585
        %v587 = vand.u32 2147483647, %v586
        %v589 = vcvt.s32.f32 %v582
        %v590 = vmul.f32 %v589, %v587
        %v591 = vxor.u32 %v590, 2147483648
        %v592 = vsel %vm509, %v591, %v590
        %v593 = vsub.s32 4, %v569
        %v594 = vsel %vm509, %v593, %v569
        %v595 = vsel %vm508, %v195, %v592
        %v596 = vsel %vm508, 0, %v594
        %v597 = vcosq.f32.pop %v595
        %v598 = vsinq.f32.pop %v595
        %vm599 = vweird.f32 %v195
        %v600 = vand.u32 %v596, 3
        %vm601 = vcmp.lt.s32.totalorder %v600, 2
        %vm602 = vcmp.eq.s32.totalorder %v600, 0
        %v603 = vxor.u32 %v598, 2147483648
        %v604 = vsel %vm602, %v597, %v603
        %vm605 = vcmp.eq.s32.totalorder %v600, 2
        %v606 = vxor.u32 %v597, 2147483648
        %v607 = vsel %vm605, %v606, %v598
        %v608 = vsel %vm601, %v604, %v607
        %v609 = vsel %vm599, nan, %v608
        %v610 = vmul.f32 %v299, %v190
        %v611 = vmul.f32 %v403, %v191
        %v612 = vmul.f32 %v184, 0.16666667
        %v613 = vmul.f32 %v185, 0.16666667
        %v614 = vsub.f32 1.0, %v612
        %v615 = vsub.f32 1.0, %v613
        %v616 = vmul.f32 %v506, 2.0
        %v617 = vmul.f32 %v609, 2.0
        %v618 = vmul.f32 %v616, %v610
        %v619 = vmul.f32 %v617, %v611
        %v620 = vsel %vm186, %v614, %v618
        %v621 = vsel %vm187, %v615, %v619
        %v622 = vmul.f32 %v184, 0.041666668
        %v623 = vmul.f32 %v185, 0.041666668
        %v624 = vsub.f32 0.5, %v622
        %v625 = vsub.f32 0.5, %v623
        %v626 = vmul.f32 %v610, 2.0
        %v627 = vmul.f32 %v611, 2.0
        %v628 = vmul.f32 %v626, %v610
        %v629 = vmul.f32 %v627, %v611
        %v630 = vsel %vm186, %v624, %v628
        %v631 = vsel %vm187, %v625, %v629
        %v632 = vmul.f32 %v620, %v168
        %v633 = vmul.f32 %v621, %v169
        %v634 = vmul.f32 %v620, %v171
        %v635 = vmul.f32 %v621, %v172
        %v636 = vmul.f32 %v620, %v174
        %v637 = vmul.f32 %v621, %v175
        %v638 = vmul.f32 %v630, %v168
        %v639 = vmul.f32 %v631, %v169
        %v640 = vmul.f32 %v638, %v171
        %v641 = vmul.f32 %v639, %v172
        %v642 = vmul.f32 %v638, %v174
        %v643 = vmul.f32 %v639, %v175
        %v644 = vmul.f32 %v630, %v171
        %v645 = vmul.f32 %v631, %v172
        %v646 = vmul.f32 %v644, %v174
        %v647 = vmul.f32 %v645, %v175
        %v648 = vmul.f32 %v630, %v176
        %v649 = vmul.f32 %v631, %v177
        %v650 = vmul.f32 %v630, %v178
        %v651 = vmul.f32 %v631, %v179
        %v652 = vmul.f32 %v630, %v180
        %v653 = vmul.f32 %v631, %v181
        %v654 = vadd.f32 %v650, %v652
        %v655 = vadd.f32 %v651, %v653
        %v656 = vsub.f32 1.0, %v654
        %v657 = vsub.f32 1.0, %v655
        %v658 = vsub.f32 %v640, %v636
        %v659 = vsub.f32 %v641, %v637
        %v660 = vadd.f32 %v642, %v634
        %v661 = vadd.f32 %v643, %v635
        %v662 = vadd.f32 %v640, %v636
        %v663 = vadd.f32 %v641, %v637
        %v664 = vadd.f32 %v648, %v652
        %v665 = vadd.f32 %v649, %v653
        %v666 = vsub.f32 1.0, %v664
        %v667 = vsub.f32 1.0, %v665
        %v668 = vsub.f32 %v646, %v632
        %v669 = vsub.f32 %v647, %v633
        %v670 = vsub.f32 %v642, %v634
        %v671 = vsub.f32 %v643, %v635
        %v672 = vadd.f32 %v646, %v632
        %v673 = vadd.f32 %v647, %v633
        %v674 = vadd.f32 %v648, %v650
        %v675 = vadd.f32 %v649, %v651
        %v676 = vsub.f32 1.0, %v674
        %v677 = vsub.f32 1.0, %v675
        %678 = vst [vmem:[%s165] sm:$0xff] %v656
        %679 = vst [vmem:[%s165 + $0x8] sm:$0xff] %v657
        %s680 = scalar_lea.vmem %s165, 16 [#allocation3]
        %681 = vst [vmem:[%s680] sm:$0xff] %v658
        %682 = vst [vmem:[%s680 + $0x8] sm:$0xff] %v659
        %s683 = scalar_lea.vmem %s165, 32 [#allocation3]
        %684 = vst [vmem:[%s683] sm:$0xff] %v660
        %685 = vst [vmem:[%s683 + $0x8] sm:$0xff] %v661
        %s686 = scalar_lea.vmem %s165, 48 [#allocation3]
        %687 = vst [vmem:[%s686] sm:$0xff] %v662
        %688 = vst [vmem:[%s686 + $0x8] sm:$0xff] %v663
        %s689 = scalar_lea.vmem %s165, 64 [#allocation3]
        %690 = vst [vmem:[%s689] sm:$0xff] %v666
        %691 = vst [vmem:[%s689 + $0x8] sm:$0xff] %v667
        %s692 = scalar_lea.vmem %s165, 80 [#allocation3]
        %693 = vst [vmem:[%s692] sm:$0xff] %v668
        %694 = vst [vmem:[%s692 + $0x8] sm:$0xff] %v669
        %s695 = scalar_lea.vmem %s165, 96 [#allocation3]
        %696 = vst [vmem:[%s695] sm:$0xff] %v670
        %697 = vst [vmem:[%s695 + $0x8] sm:$0xff] %v671
        %s698 = scalar_lea.vmem %s165, 112 [#allocation3]
        %699 = vst [vmem:[%s698] sm:$0xff] %v672
        %700 = vst [vmem:[%s698 + $0x8] sm:$0xff] %v673
        %s701 = scalar_lea.vmem %s165, 128 [#allocation3]
        %702 = vst [vmem:[%s701] sm:$0xff] %v676
        %703 = vst [vmem:[%s701 + $0x8] sm:$0xff] %v677
        %s704 = sand.u32 %s46, 1
        %s705 = sand.u32 %s46, 1
        %s706 = smul.addr %s705, 144
        %s707 = scalar_lea.vmem [#allocation3], %s706
        // Predicated region
        $region63: #{rotvec_to_rotmat.1} parent=57 // pred_check
          %p708 = pneg %p56
        $region64: #{rotvec_to_rotmat.1} parent=57 // pred_check_branch
          %710 = sbr.rel (%p708) target = $region66
        $region65: #{rotvec_to_rotmat.1} parent=57 // pred_region
          %s711 = smul.u32 2, %s12
          %s712 = smul.addr %s711, 8
          %s713 = scalar_lea.vmem %s1, %s712
          // Predicated region
          $region67: #{rotvec_to_rotmat.1} parent=65 // pred_check
            _
          $region68: #{rotvec_to_rotmat.1} parent=65 // pred_check_branch
            %715 = sbr.rel (0) target = $region70
          $region69: #{rotvec_to_rotmat.1} parent=65 // pred_region
            // Predicated region
            $region71: #{rotvec_to_rotmat.1} parent=69 // pred_check
              _
            $region72: #{rotvec_to_rotmat.1} parent=69 // pred_check_branch
              %717 = sbr.rel (0) target = $region74
            $region73: #{rotvec_to_rotmat.1} parent=69 // pred_region
              // Predicated region
              $region86: #{rotvec_to_rotmat.1} parent=73 // pred_check
                _
              $region87: #{rotvec_to_rotmat.1} parent=73 // pred_check_branch
                %766 = sbr.rel (0) target = $region89
              $region88: #{rotvec_to_rotmat.1} parent=73 // pred_region
                loop: start=0, step=1, limit=1
                $region90: #{rotvec_to_rotmat.1} parent=88 // loop_pre_header
                  _
                $region91: #{rotvec_to_rotmat.1} parent=88 // loop_header
                  %s768 = sphi 0, %s772
                  %p769 = scmp.ge.s32.totalorder %s768, 1
                  %s773 = sphi %s707, %s707
                  %s774 = sphi %s713, %s713
                $region92: #{rotvec_to_rotmat.1} parent=88 // loop_header_branch
                  %771 = sbr.rel (%p769) target = $region96
                $region93: #{rotvec_to_rotmat.1} parent=88 // loop_body
                  %v775 = vld [vmem:[%s773] sm:$0xff]
                  %776 = vst [vmem:[%s774] sm:$0xff] %v775
                  %v777 = vld [vmem:[%s773 + $0x8] sm:$0xff]
                  %778 = vst [vmem:[%s774 + $0x8] sm:$0xff] %v777
                  %v779 = vld [vmem:[%s773 + $0x10] sm:$0xff]
                  %780 = vst [vmem:[%s774 + $0x20] sm:$0xff] %v779
                  %v781 = vld [vmem:[%s773 + $0x18] sm:$0xff]
                  %782 = vst [vmem:[%s774 + $0x28] sm:$0xff] %v781
                  %v783 = vld [vmem:[%s773 + $0x20] sm:$0xff]
                  %784 = vst [vmem:[%s774 + $0x40] sm:$0xff] %v783
                  %v785 = vld [vmem:[%s773 + $0x28] sm:$0xff]
                  %786 = vst [vmem:[%s774 + $0x48] sm:$0xff] %v785
                  %v787 = vld [vmem:[%s773 + $0x30] sm:$0xff]
                  %788 = vst [vmem:[%s774 + $0x60] sm:$0xff] %v787
                  %v789 = vld [vmem:[%s773 + $0x38] sm:$0xff]
                  %790 = vst [vmem:[%s774 + $0x68] sm:$0xff] %v789
                  %v791 = vld [vmem:[%s773 + $0x40] sm:$0xff]
                  %792 = vst [vmem:[%s774 + $0x80] sm:$0xff] %v791
                  %v793 = vld [vmem:[%s773 + $0x48] sm:$0xff]
                  %794 = vst [vmem:[%s774 + $0x88] sm:$0xff] %v793
                  %v795 = vld [vmem:[%s773 + $0x50] sm:$0xff]
                  %796 = vst [vmem:[%s774 + $0xa0] sm:$0xff] %v795
                  %v797 = vld [vmem:[%s773 + $0x58] sm:$0xff]
                  %798 = vst [vmem:[%s774 + $0xa8] sm:$0xff] %v797
                  %v799 = vld [vmem:[%s773 + $0x60] sm:$0xff]
                  %800 = vst [vmem:[%s774 + $0xc0] sm:$0xff] %v799
                  %v801 = vld [vmem:[%s773 + $0x68] sm:$0xff]
                  %802 = vst [vmem:[%s774 + $0xc8] sm:$0xff] %v801
                  %v803 = vld [vmem:[%s773 + $0x70] sm:$0xff]
                  %804 = vst [vmem:[%s774 + $0xe0] sm:$0xff] %v803
                  %v805 = vld [vmem:[%s773 + $0x78] sm:$0xff]
                  %806 = vst [vmem:[%s774 + $0xe8] sm:$0xff] %v805
                  %v807 = vld [vmem:[%s773 + $0x80] sm:$0xff]
                  %808 = vst [vmem:[%s774 + $0x100] sm:$0xff] %v807
                  %v809 = vld [vmem:[%s773 + $0x88] sm:$0xff]
                  %810 = vst [vmem:[%s774 + $0x108] sm:$0xff] %v809
                $region94: #{rotvec_to_rotmat.1} parent=88 // loop_footer
                  %s772 = sadd.s32 1, %s768
                $region95: #{rotvec_to_rotmat.1} parent=88 // loop_footer_branch
                  %767 = sbr.rel target = $region91
                $region96: #{rotvec_to_rotmat.1} parent=88 // loop_exit
                  _
              $region89: #{rotvec_to_rotmat.1} parent=73 // pred_fallthru
                _
              // Predicated region
              $region97: #{rotvec_to_rotmat.1} parent=73 // pred_check
                _
              $region98: #{rotvec_to_rotmat.1} parent=73 // pred_check_branch
                %812 = sbr.rel target = $region100
              $region99: #{rotvec_to_rotmat.1} parent=73 // pred_region
                _
              $region100: #{rotvec_to_rotmat.1} parent=73 // pred_fallthru
                _
            $region74: #{rotvec_to_rotmat.1} parent=69 // pred_fallthru
              _
            // Predicated region
            $region75: #{rotvec_to_rotmat.1} parent=69 // pred_check
              _
            $region76: #{rotvec_to_rotmat.1} parent=69 // pred_check_branch
              %719 = sbr.rel target = $region78
            $region77: #{rotvec_to_rotmat.1} parent=69 // pred_region
              loop: start=0, step=1, limit=1
              $region79: #{rotvec_to_rotmat.1} parent=77 // loop_pre_header
                _
              $region80: #{rotvec_to_rotmat.1} parent=77 // loop_header
                %s722 = sphi 0, %s726
                %p723 = scmp.ge.s32.totalorder %s722, 1
                %s727 = sphi %s707, %s707
                %s728 = sphi %s713, %s713
              $region81: #{rotvec_to_rotmat.1} parent=77 // loop_header_branch
                %725 = sbr.rel (%p723) target = $region85
              $region82: #{rotvec_to_rotmat.1} parent=77 // loop_body
                %v729 = vld [vmem:[%s727] sm:$0xff]
                %730 = vst [vmem:[%s728] sm:$0xff] %v729
                %v731 = vld [vmem:[%s727 + $0x8] sm:$0xff]
                %732 = vst [vmem:[%s728 + $0x8] sm:$0xff] %v731
                %v733 = vld [vmem:[%s727 + $0x10] sm:$0xff]
                %734 = vst [vmem:[%s728 + $0x20] sm:$0xff] %v733
                %v735 = vld [vmem:[%s727 + $0x18] sm:$0xff]
                %736 = vst [vmem:[%s728 + $0x28] sm:$0xff] %v735
                %v737 = vld [vmem:[%s727 + $0x20] sm:$0xff]
                %738 = vst [vmem:[%s728 + $0x40] sm:$0xff] %v737
                %v739 = vld [vmem:[%s727 + $0x28] sm:$0xff]
                %740 = vst [vmem:[%s728 + $0x48] sm:$0xff] %v739
                %v741 = vld [vmem:[%s727 + $0x30] sm:$0xff]
                %742 = vst [vmem:[%s728 + $0x60] sm:$0xff] %v741
                %v743 = vld [vmem:[%s727 + $0x38] sm:$0xff]
                %744 = vst [vmem:[%s728 + $0x68] sm:$0xff] %v743
                %v745 = vld [vmem:[%s727 + $0x40] sm:$0xff]
                %746 = vst [vmem:[%s728 + $0x80] sm:$0xff] %v745
                %v747 = vld [vmem:[%s727 + $0x48] sm:$0xff]
                %748 = vst [vmem:[%s728 + $0x88] sm:$0xff] %v747
                %v749 = vld [vmem:[%s727 + $0x50] sm:$0xff]
                %750 = vst [vmem:[%s728 + $0xa0] sm:$0xff] %v749
                %v751 = vld [vmem:[%s727 + $0x58] sm:$0xff]
                %752 = vst [vmem:[%s728 + $0xa8] sm:$0xff] %v751
                %v753 = vld [vmem:[%s727 + $0x60] sm:$0xff]
                %754 = vst [vmem:[%s728 + $0xc0] sm:$0xff] %v753
                %v755 = vld [vmem:[%s727 + $0x68] sm:$0xff]
                %756 = vst [vmem:[%s728 + $0xc8] sm:$0xff] %v755
                %v757 = vld [vmem:[%s727 + $0x70] sm:$0xff]
                %758 = vst [vmem:[%s728 + $0xe0] sm:$0xff] %v757
                %v759 = vld [vmem:[%s727 + $0x78] sm:$0xff]
                %760 = vst [vmem:[%s728 + $0xe8] sm:$0xff] %v759
                %v761 = vld [vmem:[%s727 + $0x80] sm:$0xff]
                %762 = vst [vmem:[%s728 + $0x100] sm:$0xff] %v761
                %v763 = vld [vmem:[%s727 + $0x88] sm:$0xff]
                %764 = vst [vmem:[%s728 + $0x108] sm:$0xff] %v763
              $region83: #{rotvec_to_rotmat.1} parent=77 // loop_footer
                %s726 = sadd.s32 1, %s722
              $region84: #{rotvec_to_rotmat.1} parent=77 // loop_footer_branch
                %721 = sbr.rel target = $region80
              $region85: #{rotvec_to_rotmat.1} parent=77 // loop_exit
                _
            $region78: #{rotvec_to_rotmat.1} parent=69 // pred_fallthru
              _
          $region70: #{rotvec_to_rotmat.1} parent=65 // pred_fallthru
            _
          %813 = vnop
        $region66: #{rotvec_to_rotmat.1} parent=57 // pred_fallthru
          _
      $region58: #{rotvec_to_rotmat.1} parent=5 // pred_fallthru
        _
      %p814 = scmp.le.s32.totalorder 2, %s7
      // Predicated region
      $region101: #{rotvec_to_rotmat.1} parent=5 // pred_check
        %p815 = pneg %p814
      $region102: #{rotvec_to_rotmat.1} parent=5 // pred_check_branch
        %817 = sbr.rel (%p815) target = $region104
      $region103: #{rotvec_to_rotmat.1} parent=5 // pred_region
        %s818 = ssub.s32 %s7, 2
        // Predicated region
        $region105: #{rotvec_to_rotmat.1} parent=103 // pred_check
          %p819 = pneg %p62
        $region106: #{rotvec_to_rotmat.1} parent=103 // pred_check_branch
          %821 = sbr.rel (%p819) target = $region108
        $region107: #{rotvec_to_rotmat.1} parent=103 // pred_region
          %s822 = sand.u32 %s47, 1
          %s823 = sand.u32 %s47, 1
          %s824 = smul.addr %s823, 144
          %s825 = scalar_lea.vmem [#allocation3], %s824
        $region108: #{rotvec_to_rotmat.1} parent=103 // pred_fallthru
          _
      $region104: #{rotvec_to_rotmat.1} parent=5 // pred_fallthru
        _
    $region6: #{rotvec_to_rotmat.1} parent=1 // loop_footer
      %s11 = sadd.s32 1, %s7
    $region7: #{rotvec_to_rotmat.1} parent=1 // loop_footer_branch
      %6 = sbr.rel target = $region3
    $region8: #{rotvec_to_rotmat.1} parent=1 // loop_exit
      _

</llo_original>
